<compile_context>
chip_gen: v7x
topology: tpu7x:2x2x1
jax: 0.10.0
libtpu: 0.0.40
codegen_flags: <defaults>
</compile_context>

<pallas_src>
import functools

import jax
import jax.numpy as jnp
from jax import lax
from jax.experimental import pallas as pl
from jax.experimental.pallas import tpu as pltpu


_LANES = 128


@functools.lru_cache(maxsize=None)
def _device_kind() -> str:
    try:
        return jax.devices()[0].device_kind.lower()
    except Exception:  # pragma: no cover - CPU/interpret fallbacks
        return ""


def _num_tensorcores() -> int:
    """TensorCores a 'parallel' grid axis can be split across on this chip."""
    kind = _device_kind()
    # v7x exposes 2 TCs per chip; v4/v5p are megacore (2 TCs).  v5e/v6e: 1.
    return 2 if ("v7" in kind or "v5p" in kind or "v4" in kind) else 1


def _default_block_rows() -> int:
    """Rows of 128 lanes per grid step, tuned to each generation's HBM BW."""
    kind = _device_kind()
    if "v7" in kind:
        return 512      # 64K lanes/step: ~1.5 MiB f32 block, amortizes step
                        # overhead at 3.2 TB/s; trivially inside 64 MiB VMEM.
    if "v6" in kind:
        return 256      # 32K lanes/step.
    return 128          # 16K lanes/step for v5e / unknown parts.


def _yolo_target_kernel(nv_ref, data_ref, out_ref, acc_ref, *, conf_thres,
                        output_type, r_blk, blocks_per_core):
    c = pl.program_id(0)            # core-split axis ("parallel")
    i = pl.program_id(1)            # block index within this core ("arbitrary")

    @pl.when(i == 0)
    def _():
        acc_ref[...] = jnp.zeros_like(acc_ref)

    # data_ref block is (6, r_blk, 128) in the native dtype; rows:
    #   0..3 = box coords, 4 = confidence, 5 = class score.
    conf = data_ref[4].astype(jnp.float32)                      # (r_blk, 128)
    keep = conf >= jnp.float32(conf_thres)

    contrib = jnp.zeros(conf.shape, jnp.float32)
    if output_type in ("class", "all"):
        contrib = contrib + data_ref[5].astype(jnp.float32)
    if output_type in ("box", "all"):
        contrib = contrib + (data_ref[0].astype(jnp.float32)
                             + data_ref[1].astype(jnp.float32)
                             + data_ref[2].astype(jnp.float32)
                             + data_ref[3].astype(jnp.float32))

    n_valid = nv_ref[0]                         # dynamic count from SMEM
    tile_id = c * blocks_per_core + i
    first_lane = tile_id * (r_blk * _LANES)

    # Only blocks that straddle (or lie past) n_valid need the iota validity
    # mask; steady-state interior blocks take the cheap path.
    interior = first_lane + r_blk * _LANES <= n_valid

    @pl.when(interior)
    def _():
        acc_ref[...] = acc_ref[...] + jnp.where(keep, contrib, 0.0)

    @pl.when(jnp.logical_not(interior))
    def _():
        # Global detection index is derived from program_id, NOT the block
        # address, so it stays correct for the clamped/partial final block.
        row = lax.broadcasted_iota(jnp.int32, conf.shape, 0)
        lane = lax.broadcasted_iota(jnp.int32, conf.shape, 1)
        glane = first_lane + row * _LANES + lane
        mask = jnp.logical_and(keep, glane < n_valid)
        acc_ref[...] = acc_ref[...] + jnp.where(mask, contrib, 0.0)

    # Cross-lane/sublane reduce + SMEM scalar write only once per core.
    @pl.when(i == pl.num_programs(1) - 1)
    def _():
        out_ref[0, 0] = jnp.sum(acc_ref[...])


def yolo_target(post_result, pre_result_boxes=None, *, conf_thres=0.5,
                output_type="all", num_valid=None, block_lanes=None):
    """Pallas implementation of _YOLOTarget.forward for [N, C] detections.

    num_valid: optional dynamic int32 count of valid leading detections
      (<= N).  Pass it together with a fixed-size (max-N) detection buffer to
      reuse a single compiled kernel across frames.  Defaults to N.
    block_lanes: optional lane-tile override; default is generation-tuned.
    """
    if output_type not in ("class", "box", "all"):
        raise ValueError(
            f"output_type must be 'class', 'box' or 'all'; got {output_type!r}")

    n = int(post_result.shape[0])
    if n == 0:
        # PyTorch returns post_result.sum() * 0.0 (forward value 0).
        return jnp.float32(0.0)

    # ---- sublane/lane-dense (6, R, 128) slab in the native dtype ----------
    if pre_result_boxes is None:
        cols = post_result[:, :6]                                   # (N, 6)
    else:
        dt = jnp.promote_types(post_result.dtype, pre_result_boxes.dtype)
        cols = jnp.concatenate(
            [pre_result_boxes[:, :4].astype(dt),
             post_result[:, 4:6].astype(dt)], axis=1)               # (N, 6)

    r_total = -(-n // _LANES)                   # ceil(N / 128) rows of lanes
    pad = r_total * _LANES - n                  # < 128 lanes: only wrapper pad
    if pad:
        cols = jnp.pad(cols, ((0, pad), (0, 0)))
    data_t = jnp.swapaxes(cols, 0, 1).reshape(6, r_total, _LANES)

    # ---- block / grid sizing ----------------------------------------------
    if block_lanes is None:
        r_blk = _default_block_rows()
    else:
        r_blk = max(8, (int(block_lanes) + _LANES - 1) // _LANES)
        r_blk = ((r_blk + 7) // 8) * 8
    # Either a multiple of 8, or the full (small) row extent of the slab.
    r_blk = min(r_blk, r_total)
    num_blocks = -(-r_total // r_blk)

    # 2-way core split only where it pays: a 2-TC part with enough blocks.
    ncores = 2 if (_num_tensorcores() >= 2 and num_blocks >= 8) else 1
    blocks_per_core = -(-num_blocks // ncores)

    nv = n if num_valid is None else num_valid
    nv_arr = jnp.asarray(nv, dtype=jnp.int32).reshape((1,))

    kernel = functools.partial(
        _yolo_target_kernel, conf_thres=float(conf_thres),
        output_type=output_type, r_blk=r_blk, blocks_per_core=blocks_per_core)

    last_block = num_blocks - 1

    def data_index_map(c, i, nv_ref):
        del nv_ref
        # Clamp so the (at most one) grid step past num_blocks introduced by
        # the 2-core rounding re-reads the last block; its contribution is
        # zeroed by the in-kernel iota mask (computed from program_id).
        return (0, jnp.minimum(c * blocks_per_core + i, last_block), 0)

    def out_index_map(c, i, nv_ref):
        del i, nv_ref
        return (c, 0)

    # NOTE: default double-buffering suffices — with 16K-64K-lane blocks the
    # body is DMA/step-overhead bound and the grid is short.  If profiling
    # shows exposed DMA on 3-4-block grids, add pipeline_mode=pl.Buffered(3)
    # to the input BlockSpec.
    partials = pl.pallas_call(
        kernel,
        out_shape=jax.ShapeDtypeStruct((ncores, 1), jnp.float32),
        grid_spec=pltpu.PrefetchScalarGridSpec(
            num_scalar_prefetch=1,
            grid=(ncores, blocks_per_core),
            in_specs=[pl.BlockSpec((6, r_blk, _LANES), data_index_map)],
            out_specs=pl.BlockSpec((1, 1), out_index_map,
                                   memory_space=pltpu.SMEM),
            scratch_shapes=[pltpu.VMEM((r_blk, _LANES), jnp.float32)],
        ),
        compiler_params=pltpu.CompilerParams(
            dimension_semantics=("parallel", "arbitrary")),
    )(nv_arr, data_t)

    return jnp.sum(partials)


def _ref_yolo(post, boxes, conf_thres, output_type):
    """Plain-JAX reference with the same semantics as the PyTorch loop."""
    post = post.astype(jnp.float32)
    boxes = post[:, :4] if boxes is None else boxes.astype(jnp.float32)
    keep = post[:, 4] >= conf_thres
    contrib = jnp.zeros((post.shape[0],), jnp.float32)
    if output_type in ("class", "all"):
        contrib = contrib + post[:, 5]
    if output_type in ("box", "all"):
        contrib = contrib + jnp.sum(boxes[:, :4], axis=1)
    return jnp.sum(jnp.where(keep, contrib, 0.0))


if __name__ == "__main__":
    key = jax.random.PRNGKey(0)
    conf_thres = 0.5

    def make_post(k, n, c, dtype):
        k1, k2, k3 = jax.random.split(k, 3)
        boxes = jax.random.uniform(k1, (n, 4), dtype=jnp.float32) * 32.0
        conf = jax.random.uniform(k2, (n, 1), dtype=jnp.float32)
        cls = jax.random.uniform(k3, (n, 1), dtype=jnp.float32)
        extra = jnp.zeros((n, max(0, c - 6)), jnp.float32)
        return jnp.concatenate([boxes, conf, cls, extra], axis=-1).astype(dtype)

    k0, k1, k2, k3, k4, kb = jax.random.split(key, 6)
    cases = [
        ("small/all/f32", make_post(k0, 200, 16, jnp.float32), None, "all"),
        ("ragged/all/f32", make_post(k1, 3000, 16, jnp.float32), None, "all"),
        ("bf16/class", make_post(k2, 1500, 16, jnp.bfloat16), None, "class"),
        ("multi-block/all/f32", make_post(k4, 70000, 16, jnp.float32), None, "all"),
    ]
    post_sep = make_post(k3, 200, 16, jnp.float32)
    boxes_sep = jax.random.uniform(kb, (200, 4), dtype=jnp.float32) * 16.0
    cases.append(("separate-boxes/box", post_sep, boxes_sep, "box"))

    for name, post, boxes, otype in cases:
        got = jax.block_until_ready(
            yolo_target(post, boxes, conf_thres=conf_thres, output_type=otype))
        want = _ref_yolo(post, boxes, conf_thres, otype)
        assert jnp.allclose(got, want, rtol=1e-4, atol=1e-2), (name, got, want)

    # Dynamic valid-count path (same compiled shapes, fewer valid detections).
    post_big = cases[3][1]
    got = jax.block_until_ready(
        yolo_target(post_big, None, conf_thres=conf_thres, output_type="all",
                    num_valid=12345))
    want = _ref_yolo(post_big[:12345], None, conf_thres, "all")
    assert jnp.allclose(got, want, rtol=1e-4, atol=1e-2), ("num_valid", got, want)

    print("KERNEL_OK")
</pallas_src>

<mosaic_0001>
module attributes {stable_mosaic.version = 11 : i64} {
  func.func @_yolo_target_kernel(%arg0: i32, %arg1: i32, %arg2: memref<1xi32, #tpu.memory_space<smem>>, %arg3: memref<6x2x128xf32, #tpu.memory_space<vmem>>, %arg4: memref<1x1xf32, #tpu.memory_space<smem>>, %arg5: memref<2x128xf32, #tpu.memory_space<vmem>>) attributes {dimension_semantics = [#tpu.dimension_semantics<parallel>, #tpu.dimension_semantics<arbitrary>], iteration_bounds = array<i64: 1, 1>, scalar_prefetch = 1 : i64, scratch_operands = 1 : i64, tpu.core_type = #tpu.core_type<tc>, window_params = [{transform_indices = @transform_0, window_bounds = array<i64: 6, 2, 128>}, {transform_indices = @transform_1, window_bounds = array<i64: 1, 1>}]} {
    %c0_i32 = arith.constant 0 : i32
    %0 = arith.cmpi eq, %arg1, %c0_i32 : i32
    %1 = arith.extui %0 : i1 to i32
    %c0_i32_0 = arith.constant 0 : i32
    %2 = arith.cmpi ne, %1, %c0_i32_0 : i32
    scf.if %2 {
      %cst_20 = arith.constant 0.000000e+00 : f32
      %37 = vector.broadcast %cst_20 : f32 to vector<2x128xf32>
      %c0_21 = arith.constant 0 : index
      %c0_22 = arith.constant 0 : index
      %38 = vector.load %arg5[%c0_21, %c0_22] : memref<2x128xf32, #tpu.memory_space<vmem>>, vector<2x128xf32>
      tpu.vector_store %arg5[%c0_21, %c0_22], %37 {strides = array<i32>} : memref<2x128xf32, #tpu.memory_space<vmem>>, vector<2x128xf32>,
    } else {
    }
    %c4 = arith.constant 4 : index
    %c0 = arith.constant 0 : index
    %c0_1 = arith.constant 0 : index
    %3 = vector.load %arg3[%c4, %c0, %c0_1] : memref<6x2x128xf32, #tpu.memory_space<vmem>>, vector<1x2x128xf32>
    %4 = vector.shape_cast %3 : vector<1x2x128xf32> to vector<2x128xf32>
    %cst = arith.constant 5.000000e-01 : f32
    %5 = vector.broadcast %cst : f32 to vector<2x128xf32>
    %6 = arith.cmpf oge, %4, %5 : vector<2x128xf32>
    %cst_2 = arith.constant 0.000000e+00 : f32
    %7 = vector.broadcast %cst_2 : f32 to vector<2x128xf32>
    %c5 = arith.constant 5 : index
    %c0_3 = arith.constant 0 : index
    %c0_4 = arith.constant 0 : index
    %8 = vector.load %arg3[%c5, %c0_3, %c0_4] : memref<6x2x128xf32, #tpu.memory_space<vmem>>, vector<1x2x128xf32>
    %9 = vector.shape_cast %8 : vector<1x2x128xf32> to vector<2x128xf32>
    %10 = arith.addf %7, %9 : vector<2x128xf32>
    %c0_5 = arith.constant 0 : index
    %c0_6 = arith.constant 0 : index
    %c0_7 = arith.constant 0 : index
    %11 = vector.load %arg3[%c0_5, %c0_6, %c0_7] : memref<6x2x128xf32, #tpu.memory_space<vmem>>, vector<1x2x128xf32>
    %12 = vector.shape_cast %11 : vector<1x2x128xf32> to vector<2x128xf32>
    %c1 = arith.constant 1 : index
    %c0_8 = arith.constant 0 : index
    %c0_9 = arith.constant 0 : index
    %13 = vector.load %arg3[%c1, %c0_8, %c0_9] : memref<6x2x128xf32, #tpu.memory_space<vmem>>, vector<1x2x128xf32>
    %14 = vector.shape_cast %13 : vector<1x2x128xf32> to vector<2x128xf32>
    %15 = arith.addf %12, %14 : vector<2x128xf32>
    %c2 = arith.constant 2 : index
    %c0_10 = arith.constant 0 : index
    %c0_11 = arith.constant 0 : index
    %16 = vector.load %arg3[%c2, %c0_10, %c0_11] : memref<6x2x128xf32, #tpu.memory_space<vmem>>, vector<1x2x128xf32>
    %17 = vector.shape_cast %16 : vector<1x2x128xf32> to vector<2x128xf32>
    %18 = arith.addf %15, %17 : vector<2x128xf32>
    %c3 = arith.constant 3 : index
    %c0_12 = arith.constant 0 : index
    %c0_13 = arith.constant 0 : index
    %19 = vector.load %arg3[%c3, %c0_12, %c0_13] : memref<6x2x128xf32, #tpu.memory_space<vmem>>, vector<1x2x128xf32>
    %20 = vector.shape_cast %19 : vector<1x2x128xf32> to vector<2x128xf32>
    %21 = arith.addf %18, %20 : vector<2x128xf32>
    %22 = arith.addf %10, %21 : vector<2x128xf32>
    %c0_14 = arith.constant 0 : index
    %23 = memref.load %arg2[%c0_14] : memref<1xi32, #tpu.memory_space<smem>>
    %c1_i32 = arith.constant 1 : i32
    %24 = arith.muli %arg0, %c1_i32 : i32
    %25 = arith.addi %24, %arg1 : i32
    %c256_i32 = arith.constant 256 : i32
    %26 = arith.muli %25, %c256_i32 : i32
    %c256_i32_15 = arith.constant 256 : i32
    %27 = arith.addi %26, %c256_i32_15 : i32
    %28 = arith.cmpi sle, %27, %23 : i32
    %29 = arith.extui %28 : i1 to i32
    %c0_i32_16 = arith.constant 0 : i32
    %30 = arith.cmpi ne, %29, %c0_i32_16 : i32
    scf.if %30 {
      %c0_20 = arith.constant 0 : index
      %c0_21 = arith.constant 0 : index
      %37 = vector.load %arg5[%c0_20, %c0_21] : memref<2x128xf32, #tpu.memory_space<vmem>>, vector<2x128xf32>
      %cst_22 = arith.constant 0.000000e+00 : f32
      %38 = vector.broadcast %cst_22 : f32 to vector<2x128xf32>
      %39 = arith.select %6, %22, %38 : vector<2x128xi1>, vector<2x128xf32>
      %40 = arith.addf %37, %39 : vector<2x128xf32>
      %c0_23 = arith.constant 0 : index
      %c0_24 = arith.constant 0 : index
      %41 = vector.load %arg5[%c0_23, %c0_24] : memref<2x128xf32, #tpu.memory_space<vmem>>, vector<2x128xf32>
      tpu.vector_store %arg5[%c0_23, %c0_24], %40 {strides = array<i32>} : memref<2x128xf32, #tpu.memory_space<vmem>>, vector<2x128xf32>,
    } else {
    }
    %true = arith.constant true
    %31 = arith.xori %28, %true : i1
    %32 = arith.extui %31 : i1 to i32
    %c0_i32_17 = arith.constant 0 : i32
    %33 = arith.cmpi ne, %32, %c0_i32_17 : i32
    scf.if %33 {
      %37 = tpu.iota {dimensions = array<i32: 0>} : vector<2x128xi32>
      %38 = tpu.iota {dimensions = array<i32: 1>} : vector<2x128xi32>
      %c128_i32 = arith.constant 128 : i32
      %39 = vector.broadcast %c128_i32 : i32 to vector<2x128xi32>
      %40 = arith.muli %37, %39 : vector<2x128xi32>
      %41 = vector.broadcast %26 : i32 to vector<2x128xi32>
      %42 = arith.addi %41, %40 : vector<2x128xi32>
      %43 = arith.addi %42, %38 : vector<2x128xi32>
      %44 = vector.broadcast %23 : i32 to vector<2x128xi32>
      %45 = arith.cmpi slt, %43, %44 : vector<2x128xi32>
      %46 = arith.andi %6, %45 : vector<2x128xi1>
      %c0_20 = arith.constant 0 : index
      %c0_21 = arith.constant 0 : index
      %47 = vector.load %arg5[%c0_20, %c0_21] : memref<2x128xf32, #tpu.memory_space<vmem>>, vector<2x128xf32>
      %cst_22 = arith.constant 0.000000e+00 : f32
      %48 = vector.broadcast %cst_22 : f32 to vector<2x128xf32>
      %49 = arith.select %46, %22, %48 : vector<2x128xi1>, vector<2x128xf32>
      %50 = arith.addf %47, %49 : vector<2x128xf32>
      %c0_23 = arith.constant 0 : index
      %c0_24 = arith.constant 0 : index
      %51 = vector.load %arg5[%c0_23, %c0_24] : memref<2x128xf32, #tpu.memory_space<vmem>>, vector<2x128xf32>
      tpu.vector_store %arg5[%c0_23, %c0_24], %50 {strides = array<i32>} : memref<2x128xf32, #tpu.memory_space<vmem>>, vector<2x128xf32>,
    } else {
    }
    %c0_i32_18 = arith.constant 0 : i32
    %34 = arith.cmpi eq, %arg1, %c0_i32_18 : i32
    %35 = arith.extui %34 : i1 to i32
    %c0_i32_19 = arith.constant 0 : i32
    %36 = arith.cmpi ne, %35, %c0_i32_19 : i32
    scf.if %36 {
      %c0_20 = arith.constant 0 : index
      %c0_21 = arith.constant 0 : index
      %37 = vector.load %arg5[%c0_20, %c0_21] : memref<2x128xf32, #tpu.memory_space<vmem>>, vector<2x128xf32>
      %38 = vector.shape_cast %37 : vector<2x128xf32> to vector<1x2x128xf32>
      %cst_22 = arith.constant dense<0.000000e+00> : vector<1xf32>
      %39 = vector.multi_reduction <add>, %38, %cst_22 [1, 2] : vector<1x2x128xf32> to vector<1xf32>
      %40 = vector.shape_cast %39 : vector<1xf32> to vector<1x1x1xf32>
      %41 = vector.extract %40[0, 0, 0] : f32 from vector<1x1x1xf32>
      %c0_23 = arith.constant 0 : index
      %c0_24 = arith.constant 0 : index
      %42 = memref.load %arg4[%c0_23, %c0_24] : memref<1x1xf32, #tpu.memory_space<smem>>
      memref.store %41, %arg4[%c0_23, %c0_24] : memref<1x1xf32, #tpu.memory_space<smem>>
    } else {
    }
    return
  }
  func.func @transform_0(%arg0: i32, %arg1: i32, %arg2: memref<1xi32, #tpu.memory_space<smem>>) -> (i32, i32, i32) {
    %c1_i32 = arith.constant 1 : i32
    %0 = arith.muli %arg0, %c1_i32 : i32
    %1 = arith.addi %0, %arg1 : i32
    %c0_i32 = arith.constant 0 : i32
    %2 = arith.minsi %1, %c0_i32 : i32
    %c0_i32_0 = arith.constant 0 : i32
    %c0_i32_1 = arith.constant 0 : i32
    %c0_i32_2 = arith.constant 0 : i32
    return %c0_i32_0, %2, %c0_i32_1 : i32, i32, i32
  }
  func.func @transform_1(%arg0: i32, %arg1: i32, %arg2: memref<1xi32, #tpu.memory_space<smem>>) -> (i32, i32) {
    %c0_i32 = arith.constant 0 : i32
    %c0_i32_0 = arith.constant 0 : i32
    return %arg0, %c0_i32 : i32, i32
  }
}

</mosaic_0001>

<llo_original>
// kernel: tpu_custom_call.1
$region0: #{tpu_custom_call.1}
  #allocation0 [shape = 'u32[]', space=smem, size = 0x4, offset = 0x4, fixed_abs, tag = 'smem constant byte address 0x4 - core index']
  #allocation1 [shape = 'u32[144,128]{1,0:T(1,128)}', space=vmem, size = 0x12000, scoped, tag = 'internal scratch']
  #allocation2 [shape = 'f32[2,128]{1,0:T(2,128)}', space=vmem, size = 0x400, scoped, tag = 'scratch operand']
  #allocation3 [shape = 's32[1]{0}', space=sflag, size = 0x4, scoped, tag = 'scoped memory for tpu_custom_call.1']
  #allocation4 [shape = 's32[1]{0:T(128)S(6)}', space=smem, size = 0x200, scoped, tag = 'prefetched SMEM operand 0']
  %s0 = inlined_call_operand.<no memory space> [shape: s32[1], index: 0, kind: input, shape index: {}]
  %s1 = inlined_call_operand.hbm [shape: f32[6,2,128], index: 1, kind: input, shape index: {}]
  %s2 = inlined_call_operand.hbm [shape: f32[1,1], index: 2, kind: output, shape index: {}]
  %s3 = sld [smem:[#allocation0]]
  $region34: #{tpu_custom_call.1} parent=0
    _
  %s5 = ssub.s32 1, %s3
  %s6 = scalar_select 0, %s5, %s3
  %7 = sst [smem:[#allocation4]] %s0
  $region1: #{tpu_custom_call.1} parent=0
    #allocation5 [shape = 'u8[6144]{0}', space=vmem, size = 0x1800, scoped, tag = 'input window, operand 1, single buffered']
    #allocation6 [shape = 's32[1]{0}', space=sflag, size = 0x4, scoped, tag = 'scoped memory for tpu_custom_call.1']
    #allocation7 [shape = 's32[1]{0}', space=sflag, size = 0x4, scoped, tag = 'scoped memory for tpu_custom_call.1']
    #allocation8 [shape = 'u8[512]{0}', space=smem, size = 0x200, scoped, tag = 'output window, operand 0, single buffered']
    %8 = vsyncpa [#allocation6], 0
    %9 = vsyncpa [#allocation7], 0
    // Predicated region
    $region2: #{tpu_custom_call.1} parent=1 // pred_check
      _
    $region3: #{tpu_custom_call.1} parent=1 // pred_check_branch
      %11 = sbr.rel (0) target = $region5
    $region4: #{tpu_custom_call.1} parent=1 // pred_region
      %s12 = sadd.s32 0, 0
      %p13 = scmp.lt.s32.totalorder %s12, 0
      %s14 = scalar_select %p13, %s12, 0
      %s16 = ssub.s32 192, 192
      %17 = vsyncadd [#allocation6], %s16
      %s18 = smul.addr %s14, 32
      %s19 = scalar_lea.hbm %s1, %s18
      %s20 = sshll.u32 [#allocation5], 4
      %s21 = int_to_ptr.vmem [resolvable:$true] %s20
      %26 = dma.hbm_to_vmem [thread:$0]  %s19, 192, %s21, [#allocation6], 32, 32, 2
    $region5: #{tpu_custom_call.1} parent=1 // pred_fallthru
      _
    // Predicated region
    $region6: #{tpu_custom_call.1} parent=1 // pred_check
      _
    $region7: #{tpu_custom_call.1} parent=1 // pred_check_branch
      %28 = sbr.rel (0) target = $region9
    $region8: #{tpu_custom_call.1} parent=1 // pred_region
      %29 = dma.done [#allocation6], 192
    $region9: #{tpu_custom_call.1} parent=1 // pred_fallthru
      _
    %s30 = sadd.s32 0, 0
    %p31 = scmp.lt.s32.totalorder %s30, 0
    %s32 = scalar_select %p31, %s30, 0
    %p33 = scmp.eq.s32.totalorder 0, 0
    // Predicated region
    $region10: #{tpu_custom_call.1} parent=1 // pred_check
      %p34 = pneg %p33
    $region11: #{tpu_custom_call.1} parent=1 // pred_check_branch
      %36 = sbr.rel (%p34) target = $region13
    $region12: #{tpu_custom_call.1} parent=1 // pred_region
      %37 = vst [vmem:[#allocation2] sm:$0x3] 0.0
    $region13: #{tpu_custom_call.1} parent=1 // pred_fallthru
      _
    %s38 = scalar_lea.vmem [#allocation5], 8
    %v39 = vld [vmem:[%s38] sm:$0x3]
    %vm40 = vcmp.ge.f32.partialorder %v39, 0.5
    %s41 = scalar_lea.vmem [#allocation5], 10
    %v42 = vld [vmem:[%s41] sm:$0x3]
    %v43 = vadd.f32 %v42, 0.0
    %v44 = vld [vmem:[#allocation5] sm:$0x3]
    %s45 = scalar_lea.vmem [#allocation5], 2
    %v46 = vld [vmem:[%s45] sm:$0x3]
    %v47 = vadd.f32 %v44, %v46
    %s48 = scalar_lea.vmem [#allocation5], 4
    %v49 = vld [vmem:[%s48] sm:$0x3]
    %v50 = vadd.f32 %v47, %v49
    %s51 = scalar_lea.vmem [#allocation5], 6
    %v52 = vld [vmem:[%s51] sm:$0x3]
    %v53 = vadd.f32 %v50, %v52
    %v54 = vadd.f32 %v43, %v53
    %s55 = sld [smem:[#allocation4]]
    %s56 = sadd.s32 0, 0
    %s57 = smul.u32 %s56, 256
    %s58 = sadd.s32 %s57, 256
    %p59 = scmp.le.s32.totalorder %s58, %s55
    // Predicated region
    $region14: #{tpu_custom_call.1} parent=1 // pred_check
      %p60 = pneg %p59
    $region15: #{tpu_custom_call.1} parent=1 // pred_check_branch
      %62 = sbr.rel (%p60) target = $region17
    $region16: #{tpu_custom_call.1} parent=1 // pred_region
      %v63 = vld [vmem:[#allocation2] sm:$0x3]
      %v64 = vsel %vm40, %v54, 0.0
      %v65 = vadd.f32 %v63, %v64
      %66 = vst [vmem:[#allocation2] sm:$0x3] %v65
    $region17: #{tpu_custom_call.1} parent=1 // pred_fallthru
      _
    %p67 = scmp.gt.s32.totalorder %s58, %s55
    // Predicated region
    $region18: #{tpu_custom_call.1} parent=1 // pred_check
      %p68 = pneg %p67
    $region19: #{tpu_custom_call.1} parent=1 // pred_check_branch
      %70 = sbr.rel (%p68) target = $region21
    $region20: #{tpu_custom_call.1} parent=1 // pred_region
      %v71 = vlaneseq
      %v72 = vshrl.u32 %v71, 7
      %v73 = vlaneseq
      %v74 = vand.u32 %v73, 127
      %v75 = vmul.u32 %v72, 128
      %v76 = vstv %s57
      %v77 = vadd.s32 %v76, %v75
      %v78 = vadd.s32 %v77, %v74
      %v79 = vstv %s55
      %vm80 = vcmp.lt.s32.totalorder %v78, %v79
      %vm81 = vmand %vm40, %vm80
      %v82 = vld [vmem:[#allocation2] sm:$0x3]
      %v83 = vsel %vm81, %v54, 0.0
      %v84 = vadd.f32 %v82, %v83
      %85 = vst [vmem:[#allocation2] sm:$0x3] %v84
    $region21: #{tpu_custom_call.1} parent=1 // pred_fallthru
      _
    // Predicated region
    $region22: #{tpu_custom_call.1} parent=1 // pred_check
      %p86 = pneg %p33
    $region23: #{tpu_custom_call.1} parent=1 // pred_check_branch
      %88 = sbr.rel (%p86) target = $region25
    $region24: #{tpu_custom_call.1} parent=1 // pred_region
      %v89 = vld [vmem:[#allocation2] sm:$0x3]
      %vm90 = vcmask 1041408
      %v91 = vsel %vm90, %v89, 0.0
      %92 = vadd.xlane.f32.xlu0 %v91
      %v93 = vpop.xlane.xlu0 %92
      %v94 = vrot.slane %v93, 4
      %v95 = vadd.f32 %v93, %v94
      %v96 = vrot.slane %v95, 2
      %v97 = vadd.f32 %v95, %v96
      %v98 = vrot.slane %v97, 1
      %v99 = vadd.f32 %v97, %v98
      %s100 = vtos %v99
      %s101 = scalar_lea.smem [#allocation8], 0
      %102 = sst [smem:[%s101]] %s100
    $region25: #{tpu_custom_call.1} parent=1 // pred_fallthru
      _
    // Predicated region
    $region26: #{tpu_custom_call.1} parent=1 // pred_check
      _
    $region27: #{tpu_custom_call.1} parent=1 // pred_check_branch
      %104 = sbr.rel (0) target = $region29
    $region28: #{tpu_custom_call.1} parent=1 // pred_region
      %s106 = ssub.s32 16, 16
      %107 = vsyncadd [#allocation7], %s106
      %110 = dma.smem_to_hbm [#allocation8], 16, %s2, [#allocation7]
    $region29: #{tpu_custom_call.1} parent=1 // pred_fallthru
      _
    // Predicated region
    $region30: #{tpu_custom_call.1} parent=1 // pred_check
      _
    $region31: #{tpu_custom_call.1} parent=1 // pred_check_branch
      %112 = sbr.rel (0) target = $region33
    $region32: #{tpu_custom_call.1} parent=1 // pred_region
      %113 = dma.done [#allocation7], 16
    $region33: #{tpu_custom_call.1} parent=1 // pred_fallthru
      _
    %114 = sfence
    %115 = vsyncpa [#allocation6], 1
    %116 = vsyncpa [#allocation7], 1

</llo_original>
